<compile_context>
chip_gen: v5e
topology: v5e:2x2
jax: 0.10.0
libtpu: 0.0.40
codegen_flags: <defaults>
</compile_context>

<pallas_src>
import jax
import jax.numpy as jnp
from jax.experimental import pallas as pl
from jax.experimental.pallas import tpu as pltpu

_LANE = 128


def _permute_matmul_kernel(x_ref, p_ref, o_ref):
    # x_ref: (1, rows_tile, K)   input tile (K = 128 lane-dense, or K = C fallback)
    # p_ref: (1, K, K)           one-hot permutation matrix, P[old, new]
    # o_ref: (1, rows_tile, K)   output tile
    o_ref[0] = jnp.dot(
        x_ref[0], p_ref[0], preferred_element_type=jnp.float32
    ).astype(o_ref.dtype)


def _pick_tile(total, target):
    """Largest tile <= target that divides `total` and is a multiple of 8 (else `total`)."""
    if total <= target:
        return total
    for cand in range(min(target, total), 7, -1):
        if total % cand == 0 and cand % 8 == 0:
            return cand
    return total


def channel_permutation(waveforms, key, permutation_prob=0.1, *, row_tile=512):
    """JAX/Pallas equivalent of ChannelPermutation.forward.

    waveforms: (batch, num_timepoints, num_channels) float array.
    Returns (augmented, perms, apply_mask).
    """
    B, T, C = waveforms.shape
    k_apply, k_perm = jax.random.split(key)

    # Per-sample Bernoulli(permutation_prob) decision (mirrors torch.rand(1) < p).
    apply = jax.random.uniform(k_apply, (B,)) < permutation_prob

    # Per-sample random permutation (vectorized), identity where not applied.
    perm_keys = jax.random.split(k_perm, B)
    rand_perms = jax.vmap(lambda k: jax.random.permutation(k, C))(perm_keys)
    rand_perms = rand_perms.astype(jnp.int32)                     # (B, C)
    identity = jnp.arange(C, dtype=jnp.int32)
    perms = jnp.where(apply[:, None], rand_perms, identity[None, :])

    # P[b, old, new] = 1 iff output channel `new` reads input channel `old`
    # (built pre-transposed so the kernel does x @ P with no in-kernel .T).
    p_small = jax.nn.one_hot(perms, C, dtype=waveforms.dtype)      # (B, new, old)
    p_small = jnp.swapaxes(p_small, -1, -2)                        # (B, old, new)

    if _LANE % C == 0 and (T * C) % _LANE == 0:
        # ---- Lane-dense fast path ----------------------------------------
        G = _LANE // C                 # timepoints packed per 128-wide row
        R = (T * C) // _LANE           # lane-dense rows per sample
        x_dense = waveforms.reshape(B, R, _LANE)

        # Block-diagonal kron(I_G, P_b): (B, 128, 128).
        eye_g = jnp.eye(G, dtype=waveforms.dtype)
        p_blk = (eye_g[None, :, None, :, None]
                 * p_small[:, None, :, None, :]).reshape(B, _LANE, _LANE)

        r_tile = _pick_tile(R, row_tile)
        grid = (B, R // r_tile)

        out = pl.pallas_call(
            _permute_matmul_kernel,
            out_shape=jax.ShapeDtypeStruct((B, R, _LANE), waveforms.dtype),
            grid=grid,
            in_specs=[
                pl.BlockSpec((1, r_tile, _LANE), lambda b, t: (b, t, 0)),
                pl.BlockSpec((1, _LANE, _LANE), lambda b, t: (b, 0, 0)),
            ],
            out_specs=pl.BlockSpec((1, r_tile, _LANE), lambda b, t: (b, t, 0)),
            compiler_params=pltpu.CompilerParams(
                dimension_semantics=("parallel", "parallel")),
        )(x_dense, p_blk)
        out = out.reshape(B, T, C)
    else:
        # ---- Generic fallback (C does not pack into 128 lanes) ------------
        t_tile = _pick_tile(T, 1024)
        grid = (B, T // t_tile)
        out = pl.pallas_call(
            _permute_matmul_kernel,
            out_shape=jax.ShapeDtypeStruct((B, T, C), waveforms.dtype),
            grid=grid,
            in_specs=[
                pl.BlockSpec((1, t_tile, C), lambda b, t: (b, t, 0)),
                pl.BlockSpec((1, C, C), lambda b, t: (b, 0, 0)),
            ],
            out_specs=pl.BlockSpec((1, t_tile, C), lambda b, t: (b, t, 0)),
            compiler_params=pltpu.CompilerParams(
                dimension_semantics=("parallel", "parallel")),
        )(waveforms, p_small)

    return out, perms, apply


if __name__ == "__main__":
    key = jax.random.PRNGKey(0)
    k_data, k_aug, k_data2, k_aug2 = jax.random.split(key, 4)

    # Fast (lane-dense) path: B=2, T=256, C=8  ->  (T*C) % 128 == 0.
    # row_tile=8 so the small demo still exercises the (B, T-tiles) grid.
    B, T, C = 2, 256, 8
    waveforms = jax.random.normal(k_data, (B, T, C), dtype=jnp.float32)
    out, perms, apply = channel_permutation(
        waveforms, k_aug, permutation_prob=0.5, row_tile=8)
    out = jax.block_until_ready(out)

    ref = jax.vmap(lambda x, p: jnp.take(x, p, axis=1))(waveforms, perms)
    assert out.shape == (B, T, C), out.shape
    assert out.dtype == waveforms.dtype, out.dtype
    assert jnp.allclose(out, ref, atol=1e-6), "fast path mismatch vs reference gather"

    # Fallback path: C=6 does not divide 128.
    B2, T2, C2 = 2, 64, 6
    w2 = jax.random.normal(k_data2, (B2, T2, C2), dtype=jnp.float32)
    out2, perms2, _ = channel_permutation(w2, k_aug2, permutation_prob=0.5)
    out2 = jax.block_until_ready(out2)
    ref2 = jax.vmap(lambda x, p: jnp.take(x, p, axis=1))(w2, perms2)
    assert jnp.allclose(out2, ref2, atol=1e-6), "fallback path mismatch vs reference gather"

    print("KERNEL_OK")
</pallas_src>

<mosaic_0001>
module attributes {stable_mosaic.version = 11 : i64} {
  func.func @_permute_matmul_kernel(%arg0: i32, %arg1: i32, %arg2: memref<1x8x128xf32, #tpu.memory_space<vmem>>, %arg3: memref<1x128x128xf32, #tpu.memory_space<vmem>>, %arg4: memref<1x8x128xf32, #tpu.memory_space<vmem>>) attributes {dimension_semantics = [#tpu.dimension_semantics<parallel>, #tpu.dimension_semantics<parallel>], iteration_bounds = array<i64: 2, 2>, scalar_prefetch = 0 : i64, scratch_operands = 0 : i64, tpu.core_type = #tpu.core_type<tc>, window_params = [{transform_indices = @transform_0, window_bounds = array<i64: 1, 8, 128>}, {transform_indices = @transform_1, window_bounds = array<i64: 1, 128, 128>}, {transform_indices = @transform_2, window_bounds = array<i64: 1, 8, 128>}]} {
    %c0 = arith.constant 0 : index
    %c0_0 = arith.constant 0 : index
    %c0_1 = arith.constant 0 : index
    %0 = vector.load %arg2[%c0, %c0_0, %c0_1] : memref<1x8x128xf32, #tpu.memory_space<vmem>>, vector<1x8x128xf32>
    %1 = vector.shape_cast %0 : vector<1x8x128xf32> to vector<8x128xf32>
    %c0_2 = arith.constant 0 : index
    %c0_3 = arith.constant 0 : index
    %c0_4 = arith.constant 0 : index
    %2 = vector.load %arg3[%c0_2, %c0_3, %c0_4] : memref<1x128x128xf32, #tpu.memory_space<vmem>>, vector<1x128x128xf32>
    %3 = vector.shape_cast %2 : vector<1x128x128xf32> to vector<128x128xf32>
    %cst = arith.constant dense<0.000000e+00> : vector<8x128xf32>
    %4 = tpu.matmul %1, %3, %cst {dimension_numbers = #tpu.dot_dimension_numbers<[1], [0], [0], [1], [0, 0, 1, 1], [], []>} : vector<8x128xf32>, vector<128x128xf32>, vector<8x128xf32> -> vector<8x128xf32>
    %c0_5 = arith.constant 0 : index
    %c0_6 = arith.constant 0 : index
    %c0_7 = arith.constant 0 : index
    %5 = vector.load %arg4[%c0_5, %c0_6, %c0_7] : memref<1x8x128xf32, #tpu.memory_space<vmem>>, vector<1x8x128xf32>
    %6 = vector.shape_cast %5 : vector<1x8x128xf32> to vector<8x128xf32>
    %7 = vector.shape_cast %4 : vector<8x128xf32> to vector<1x8x128xf32>
    tpu.vector_store %arg4[%c0_5, %c0_6, %c0_7], %7 {strides = array<i32>} : memref<1x8x128xf32, #tpu.memory_space<vmem>>, vector<1x8x128xf32>,
    return
  }
  func.func @transform_0(%arg0: i32, %arg1: i32) -> (i32, i32, i32) {
    %c0_i32 = arith.constant 0 : i32
    %c0_i32_0 = arith.constant 0 : i32
    return %arg0, %arg1, %c0_i32 : i32, i32, i32
  }
  func.func @transform_1(%arg0: i32, %arg1: i32) -> (i32, i32, i32) {
    %c0_i32 = arith.constant 0 : i32
    %c0_i32_0 = arith.constant 0 : i32
    %c0_i32_1 = arith.constant 0 : i32
    return %arg0, %c0_i32, %c0_i32_0 : i32, i32, i32
  }
  func.func @transform_2(%arg0: i32, %arg1: i32) -> (i32, i32, i32) {
    %c0_i32 = arith.constant 0 : i32
    %c0_i32_0 = arith.constant 0 : i32
    return %arg0, %arg1, %c0_i32 : i32, i32, i32
  }
}

</mosaic_0001>

<llo_original>
// kernel: tpu_custom_call.1
$region0: #{tpu_custom_call.1}
  #allocation0 [shape = 'u32[]', space=smem, size = 0x4, offset = 0x4, fixed_abs, tag = 'smem constant byte address 0x4 - core index']
  #allocation1 [shape = 'u32[72,128]{1,0:T(1,128)}', space=vmem, size = 0x9000, scoped, tag = 'internal scratch']
  %s0 = inlined_call_operand.hbm [shape: f32[2,16,128], index: 0, kind: input, shape index: {}]
  %s1 = inlined_call_operand.hbm [shape: f32[2,128,128], index: 1, kind: input, shape index: {}]
  %s2 = inlined_call_operand.hbm [shape: f32[2,16,128], index: 2, kind: output, shape index: {}]
  %s3 = sld [smem:[#allocation0]]
  $region49: #{tpu_custom_call.1} parent=0
    _
  %s5 = ssub.s32 1, %s3
  %s6 = scalar_select 0, %s5, %s3
  $region1: #{tpu_custom_call.1} parent=0
    #allocation2 [shape = 'u8[8192]{0}', space=vmem, size = 0x2000, scoped, tag = 'input window, operand 0']
    #allocation3 [shape = 's32[2]{0}', space=sflag, size = 0x8, scoped, tag = 'scoped memory for tpu_custom_call.1']
    #allocation4 [shape = 's32[2]{0}', space=sflag, size = 0x8, scoped, tag = 'scoped memory for tpu_custom_call.1']
    #allocation5 [shape = 'u8[131072]{0}', space=vmem, size = 0x20000, scoped, tag = 'input window, operand 1']
    #allocation6 [shape = 's32[2]{0}', space=sflag, size = 0x8, scoped, tag = 'scoped memory for tpu_custom_call.1']
    #allocation7 [shape = 'u8[8192]{0}', space=vmem, size = 0x2000, scoped, tag = 'output window, operand 0']
    %7 = vsyncpa [#allocation3], 0
    %s8 = scalar_lea.sflag [#allocation3], 1
    %9 = vsyncpa %s8, 0
    %10 = vsyncpa [#allocation6], 0
    %s11 = scalar_lea.sflag [#allocation6], 1
    %12 = vsyncpa %s11, 0
    %13 = vsyncpa [#allocation4], 0
    %s14 = scalar_lea.sflag [#allocation4], 1
    %15 = vsyncpa %s14, 0
    loop: start=0, step=1, limit=6
    $region2: #{tpu_custom_call.1} parent=1 // loop_pre_header
      _
    $region3: #{tpu_custom_call.1} parent=1 // loop_header
      %s17 = sphi 0, %s21
      %p18 = scmp.ge.s32.totalorder %s17, 6
      %s24 = sphi 0, %s36
      %s25 = sphi 0, %s32
      %s26 = sphi 0, %s24
      %s27 = sphi 0, %s25
      %s28 = sphi 0, %s26
      %s29 = sphi 0, %s27
      %s41 = sphi 0, %s43
      %s44 = sphi 0, %s41
      %s45 = sphi 0, %s44
      %s61 = sphi 0, %s45
      %s67 = sphi 0, %s69
      %s70 = sphi 0, %s67
      %s71 = sphi 0, %s70
      %s87 = sphi 0, %s71
      %s95 = sphi 0, %s97
      %s98 = sphi 0, %s95
      %s99 = sphi 0, %s98
      %s115 = sphi 0, %s99
    $region4: #{tpu_custom_call.1} parent=1 // loop_header_branch
      %20 = sbr.rel (%p18) target = $region8
    $region5: #{tpu_custom_call.1} parent=1 // loop_body
      %s22 = ssub.s32 %s17, 1
      %s23 = ssub.s32 %s17, 2
      %s30 = sadd.s32 1, %s25
      %p31 = scmp.ge.s32.totalorder %s30, 2
      %s32 = scalar_select %p31, 0, %s30
      %s33 = sadd.s32 1, %s24
      %s34 = scalar_select %p31, %s33, %s24
      %p35 = scmp.ge.s32.totalorder %s34, 2
      %s36 = scalar_select %p35, 0, %s34
      %s37 = ssub.s32 %s24, %s36
      %s38 = ssub.s32 %s25, %s32
      %s39 = sor.u32 %s37, %s38
      %p40 = scmp.eq.s32.totalorder %s39, 0
      %s42 = sadd.s32 %s41, 1
      %s43 = scalar_select %p40, %s41, %s42
      %p46 = pneg %p40
      %p47 = scmp.eq.s32.totalorder %s17, 3
      %p48 = por %p46, %p47
      %p49 = scmp.ne.s32.totalorder %s41, %s44
      %p50 = scmp.eq.s32.totalorder %s17, 0
      %p51 = por %p49, %p50
      %p52 = scmp.ne.s32.totalorder %s41, %s44
      %p53 = scmp.eq.s32.totalorder %s22, 3
      %p54 = por %p52, %p53
      %p55 = scmp.ne.s32.totalorder %s44, %s45
      %p56 = scmp.eq.s32.totalorder %s22, 0
      %p57 = por %p55, %p56
      %p58 = scmp.ne.s32.totalorder %s44, %s45
      %p59 = scmp.eq.s32.totalorder %s23, 3
      %p60 = por %p58, %p59
      %p62 = scmp.ne.s32.totalorder %s45, %s61
      %p63 = scmp.eq.s32.totalorder %s23, 0
      %p64 = por %p62, %p63
      %s65 = ssub.s32 %s24, %s36
      %p66 = scmp.eq.s32.totalorder %s65, 0
      %s68 = sadd.s32 %s67, 1
      %s69 = scalar_select %p66, %s67, %s68
      %p72 = pneg %p66
      %p73 = scmp.eq.s32.totalorder %s17, 3
      %p74 = por %p72, %p73
      %p75 = scmp.ne.s32.totalorder %s67, %s70
      %p76 = scmp.eq.s32.totalorder %s17, 0
      %p77 = por %p75, %p76
      %p78 = scmp.ne.s32.totalorder %s67, %s70
      %p79 = scmp.eq.s32.totalorder %s22, 3
      %p80 = por %p78, %p79
      %p81 = scmp.ne.s32.totalorder %s70, %s71
      %p82 = scmp.eq.s32.totalorder %s22, 0
      %p83 = por %p81, %p82
      %p84 = scmp.ne.s32.totalorder %s70, %s71
      %p85 = scmp.eq.s32.totalorder %s23, 3
      %p86 = por %p84, %p85
      %p88 = scmp.ne.s32.totalorder %s71, %s87
      %p89 = scmp.eq.s32.totalorder %s23, 0
      %p90 = por %p88, %p89
      %s91 = ssub.s32 %s24, %s36
      %s92 = ssub.s32 %s25, %s32
      %s93 = sor.u32 %s91, %s92
      %p94 = scmp.eq.s32.totalorder %s93, 0
      %s96 = sadd.s32 %s95, 1
      %s97 = scalar_select %p94, %s95, %s96
      %p100 = pneg %p94
      %p101 = scmp.eq.s32.totalorder %s17, 3
      %p102 = por %p100, %p101
      %p103 = scmp.ne.s32.totalorder %s95, %s98
      %p104 = scmp.eq.s32.totalorder %s17, 0
      %p105 = por %p103, %p104
      %p106 = scmp.ne.s32.totalorder %s95, %s98
      %p107 = scmp.eq.s32.totalorder %s22, 3
      %p108 = por %p106, %p107
      %p109 = scmp.ne.s32.totalorder %s98, %s99
      %p110 = scmp.eq.s32.totalorder %s22, 0
      %p111 = por %p109, %p110
      %p112 = scmp.ne.s32.totalorder %s98, %s99
      %p113 = scmp.eq.s32.totalorder %s23, 3
      %p114 = por %p112, %p113
      %p116 = scmp.ne.s32.totalorder %s99, %s115
      %p117 = scmp.eq.s32.totalorder %s23, 0
      %p118 = por %p116, %p117
      %p119 = scmp.le.s32.totalorder 1, %s17
      %p120 = scmp.lt.s32.totalorder %s17, 5
      %p121 = pnand %p119, %p120
      %p122 = pneg %p121
      // Predicated region
      $region9: #{tpu_custom_call.1} parent=5 // pred_check
        _
      $region10: #{tpu_custom_call.1} parent=5 // pred_check_branch
        %124 = sbr.rel (%p121) target = $region12
      $region11: #{tpu_custom_call.1} parent=5 // pred_region
        %s125 = ssub.s32 %s17, 1
      $region12: #{tpu_custom_call.1} parent=5 // pred_fallthru
        _
      %p126 = scmp.lt.s32.totalorder %s17, 4
      // Predicated region
      $region13: #{tpu_custom_call.1} parent=5 // pred_check
        %p127 = pneg %p126
      $region14: #{tpu_custom_call.1} parent=5 // pred_check_branch
        %129 = sbr.rel (%p127) target = $region16
      $region15: #{tpu_custom_call.1} parent=5 // pred_region
        // Predicated region
        $region17: #{tpu_custom_call.1} parent=15 // pred_check
          %p130 = pneg %p51
        $region18: #{tpu_custom_call.1} parent=15 // pred_check_branch
          %132 = sbr.rel (%p130) target = $region20
        $region19: #{tpu_custom_call.1} parent=15 // pred_region
          %s133 = sand.u32 %s41, 1
          %s134 = scalar_lea.sflag [#allocation3], %s133
          %s135 = sand.u32 %s41, 1
          %s136 = smul.addr %s135, 8
          %s137 = scalar_lea.vmem [#allocation2], %s136
          %139 = vsyncadd %s134, 0
          %s140 = smul.addr %s24, 2
          %s141 = sadd.s32 %s25, %s140
          %s142 = smul.addr %s141, 8
          %s143 = scalar_lea.hbm %s0, %s142
          %s145 = sshll.u32 %s143, 4
          %s146 = int_to_ptr.hbm [resolvable:$true] %s145
          %s147 = sshll.u32 %s137, 4
          %s148 = int_to_ptr.vmem [resolvable:$true] %s147
          %150 = dma.hbm_to_vmem [thread:$0]  %s146, 128, %s148, %s134
        $region20: #{tpu_custom_call.1} parent=15 // pred_fallthru
          _
        // Predicated region
        $region21: #{tpu_custom_call.1} parent=15 // pred_check
          %p151 = pneg %p77
        $region22: #{tpu_custom_call.1} parent=15 // pred_check_branch
          %153 = sbr.rel (%p151) target = $region24
        $region23: #{tpu_custom_call.1} parent=15 // pred_region
          %s154 = sand.u32 %s67, 1
          %s155 = scalar_lea.sflag [#allocation6], %s154
          %s156 = sand.u32 %s67, 1
          %s157 = smul.addr %s156, 128
          %s158 = scalar_lea.vmem [#allocation5], %s157
          %160 = vsyncadd %s155, 0
          %s161 = smul.addr %s24, 16
          %s162 = smul.addr %s161, 8
          %s163 = scalar_lea.hbm %s1, %s162
          %s164 = sshll.u32 %s163, 4
          %s165 = int_to_ptr.hbm [resolvable:$true] %s164
          %s166 = sshll.u32 %s158, 4
          %s167 = int_to_ptr.vmem [resolvable:$true] %s166
          %172 = dma.hbm_to_vmem [thread:$0]  %s165, 2048, %s167, %s155, 128, 128, 8
        $region24: #{tpu_custom_call.1} parent=15 // pred_fallthru
          _
      $region16: #{tpu_custom_call.1} parent=5 // pred_fallthru
        _
      %p173 = scmp.le.s32.totalorder 1, %s17
      %p174 = scmp.lt.s32.totalorder %s17, 5
      %p175 = pnand %p173, %p174
      %p176 = pneg %p175
      // Predicated region
      $region25: #{tpu_custom_call.1} parent=5 // pred_check
        _
      $region26: #{tpu_custom_call.1} parent=5 // pred_check_branch
        %178 = sbr.rel (%p175) target = $region28
      $region27: #{tpu_custom_call.1} parent=5 // pred_region
        %s179 = ssub.s32 %s17, 1
        %s180 = sand.u32 %s44, 1
        %s181 = scalar_lea.sflag [#allocation3], %s180
        %s182 = sand.u32 %s44, 1
        %s183 = smul.addr %s182, 8
        %s184 = scalar_lea.vmem [#allocation2], %s183
        // Predicated region
        $region29: #{tpu_custom_call.1} parent=27 // pred_check
          %p185 = pneg %p57
        $region30: #{tpu_custom_call.1} parent=27 // pred_check_branch
          %187 = sbr.rel (%p185) target = $region32
        $region31: #{tpu_custom_call.1} parent=27 // pred_region
          %189 = dma.done %s181, 128
        $region32: #{tpu_custom_call.1} parent=27 // pred_fallthru
          _
        %s190 = sand.u32 %s70, 1
        %s191 = scalar_lea.sflag [#allocation6], %s190
        %s192 = sand.u32 %s70, 1
        %s193 = smul.addr %s192, 128
        %s194 = scalar_lea.vmem [#allocation5], %s193
        // Predicated region
        $region33: #{tpu_custom_call.1} parent=27 // pred_check
          %p195 = pneg %p83
        $region34: #{tpu_custom_call.1} parent=27 // pred_check_branch
          %197 = sbr.rel (%p195) target = $region36
        $region35: #{tpu_custom_call.1} parent=27 // pred_region
          %199 = dma.done %s191, 2048
        $region36: #{tpu_custom_call.1} parent=27 // pred_fallthru
          _
        %s200 = sand.u32 %s44, 1
        %s201 = scalar_lea.sflag [#allocation3], %s200
        %s202 = sand.u32 %s44, 1
        %s203 = smul.addr %s202, 8
        %s204 = scalar_lea.vmem [#allocation2], %s203
        %p205 = pneg %p57
        %p206 = pneg %p54
        %s207 = sand.u32 %s70, 1
        %s208 = scalar_lea.sflag [#allocation6], %s207
        %s209 = sand.u32 %s70, 1
        %s210 = smul.addr %s209, 128
        %s211 = scalar_lea.vmem [#allocation5], %s210
        %p212 = pneg %p83
        %p213 = pneg %p80
        %p214 = pneg %p111
        %p215 = pneg %p108
        %s216 = sand.u32 %s98, 1
        %s217 = scalar_lea.sflag [#allocation4], %s216
        %s218 = sand.u32 %s98, 1
        %s219 = smul.addr %s218, 8
        %s220 = scalar_lea.vmem [#allocation7], %s219
        %v221 = vld [vmem:[%s184] sm:$0xff]
        %v222 = vld [vmem:[%s194] sm:$0xff]
        %v223 = vld [vmem:[%s194 + $0x8] sm:$0xff]
        %v224 = vld [vmem:[%s194 + $0x10] sm:$0xff]
        %v225 = vld [vmem:[%s194 + $0x18] sm:$0xff]
        %v226 = vld [vmem:[%s194 + $0x20] sm:$0xff]
        %v227 = vld [vmem:[%s194 + $0x28] sm:$0xff]
        %v228 = vld [vmem:[%s194 + $0x30] sm:$0xff]
        %v229 = vld [vmem:[%s194 + $0x38] sm:$0xff]
        %v230 = vld [vmem:[%s194 + $0x40] sm:$0xff]
        %v231 = vld [vmem:[%s194 + $0x48] sm:$0xff]
        %v232 = vld [vmem:[%s194 + $0x50] sm:$0xff]
        %v233 = vld [vmem:[%s194 + $0x58] sm:$0xff]
        %v234 = vld [vmem:[%s194 + $0x60] sm:$0xff]
        %v235 = vld [vmem:[%s194 + $0x68] sm:$0xff]
        %v236 = vld [vmem:[%s194 + $0x70] sm:$0xff]
        %v237 = vld [vmem:[%s194 + $0x78] sm:$0xff]
        %238 = vmatpush.msra.mxu0 %v237
        %239 = vmatpush.msra.mxu0 %v236
        %240 = vmatpush.msra.mxu0 %v235
        %241 = vmatpush.msra.mxu0 %v234
        %242 = vmatpush.msra.mxu0 %v233
        %243 = vmatpush.msra.mxu0 %v232
        %244 = vmatpush.msra.mxu0 %v231
        %245 = vmatpush.msra.mxu0 %v230
        %246 = vmatpush.msra.mxu0 %v229
        %247 = vmatpush.msra.mxu0 %v228
        %248 = vmatpush.msra.mxu0 %v227
        %249 = vmatpush.msra.mxu0 %v226
        %250 = vmatpush.msra.mxu0 %v225
        %251 = vmatpush.msra.mxu0 %v224
        %252 = vmatpush.msra.mxu0 %v223
        %253 = vmatpush.msra.mxu0 %v222
        %254 = vmatmul.f32.gmra.mxu0 %v221
        %v255 = vpop.f32.mrf.mxu0
        %v256 = vadd.f32 0.0, %v255
        %257 = vdwg.mxu0
        %258 = vst [vmem:[%s220] sm:$0xff] %v256
        %s259 = sand.u32 %s98, 1
        %s260 = scalar_lea.sflag [#allocation4], %s259
        %s261 = sand.u32 %s98, 1
        %s262 = smul.addr %s261, 8
        %s263 = scalar_lea.vmem [#allocation7], %s262
        // Predicated region
        $region37: #{tpu_custom_call.1} parent=27 // pred_check
          %p264 = pneg %p108
        $region38: #{tpu_custom_call.1} parent=27 // pred_check_branch
          %266 = sbr.rel (%p264) target = $region40
        $region39: #{tpu_custom_call.1} parent=27 // pred_region
          %268 = vsyncadd %s260, 0
          %s269 = smul.addr %s26, 2
          %s270 = sadd.s32 %s27, %s269
          %s271 = smul.addr %s270, 8
          %s272 = scalar_lea.hbm %s2, %s271
          %s274 = sshll.u32 %s263, 4
          %s275 = int_to_ptr.vmem [resolvable:$true] %s274
          %s276 = sshll.u32 %s272, 4
          %s277 = int_to_ptr.hbm [resolvable:$true] %s276
          %279 = dma.vmem_to_hbm [thread:$0]  %s275, 128, %s277, %s260
        $region40: #{tpu_custom_call.1} parent=27 // pred_fallthru
          _
      $region28: #{tpu_custom_call.1} parent=5 // pred_fallthru
        _
      %p280 = scmp.le.s32.totalorder 2, %s17
      // Predicated region
      $region41: #{tpu_custom_call.1} parent=5 // pred_check
        %p281 = pneg %p280
      $region42: #{tpu_custom_call.1} parent=5 // pred_check_branch
        %283 = sbr.rel (%p281) target = $region44
      $region43: #{tpu_custom_call.1} parent=5 // pred_region
        %s284 = ssub.s32 %s17, 2
        // Predicated region
        $region45: #{tpu_custom_call.1} parent=43 // pred_check
          %p285 = pneg %p114
        $region46: #{tpu_custom_call.1} parent=43 // pred_check_branch
          %287 = sbr.rel (%p285) target = $region48
        $region47: #{tpu_custom_call.1} parent=43 // pred_region
          %s288 = sand.u32 %s99, 1
          %s289 = scalar_lea.sflag [#allocation4], %s288
          %s290 = sand.u32 %s99, 1
          %s291 = smul.addr %s290, 8
          %s292 = scalar_lea.vmem [#allocation7], %s291
          %294 = dma.done %s289, 128
        $region48: #{tpu_custom_call.1} parent=43 // pred_fallthru
          _
      $region44: #{tpu_custom_call.1} parent=5 // pred_fallthru
        _
    $region6: #{tpu_custom_call.1} parent=1 // loop_footer
      %s21 = sadd.s32 1, %s17
    $region7: #{tpu_custom_call.1} parent=1 // loop_footer_branch
      %16 = sbr.rel target = $region3
    $region8: #{tpu_custom_call.1} parent=1 // loop_exit
      _
    %295 = vsyncpa [#allocation3], 1
    %s296 = scalar_lea.sflag [#allocation3], 1
    %297 = vsyncpa %s296, 1
    %298 = vsyncpa [#allocation6], 1
    %s299 = scalar_lea.sflag [#allocation6], 1
    %300 = vsyncpa %s299, 1
    %301 = vsyncpa [#allocation4], 1
    %s302 = scalar_lea.sflag [#allocation4], 1
    %303 = vsyncpa %s302, 1

</llo_original>
